<compile_context>
chip_gen: v7x
topology: tpu7x:2x2x1
jax: 0.10.0
libtpu: 0.0.40
codegen_flags: <defaults>
</compile_context>

<pallas_src>
import functools

import jax
import jax.numpy as jnp
from jax.experimental import pallas as pl
from jax.experimental.pallas import tpu as pltpu

_NEG_INF = -1e30                          # masks padded class columns
_VMEM_SIZING_BUDGET = 26 * 1024 * 1024    # conservative kernel-VMEM sizing budget
_VMEM_LIMIT_BYTES = 32 * 1024 * 1024      # explicit scoped-VMEM limit (>= v5e default)


def _round_up(v, m):
    return -(-v // m) * m


def _single_buffered_spec(block_shape, index_map):
    """BlockSpec for grid-invariant operands (W^T, bias): single buffer.

    Default pipelining double-buffers even constant-index operands, wasting
    E*Cp*itemsize of VMEM.  Falls back to the default spec if this JAX build
    does not expose pipeline_mode / pl.Buffered.
    """
    try:
        return pl.BlockSpec(block_shape, index_map, pipeline_mode=pl.Buffered(1))
    except (AttributeError, TypeError):
        return pl.BlockSpec(block_shape, index_map)


def _dot_classifier_kernel(x_ref, w_ref, b_ref, o_ref, acc_ref):
    """One (TM, Cp) output tile; accumulates over the K (embed) grid axis."""
    k = pl.program_id(1)

    @pl.when(k == 0)
    def _():
        acc_ref[...] = jnp.zeros_like(acc_ref)

    # Linear: logits += x_tile @ W^T_tile  (f32 MXU accumulate).
    acc_ref[...] += jnp.dot(x_ref[...], w_ref[...],
                            preferred_element_type=jnp.float32)

    @pl.when(k == pl.num_programs(1) - 1)
    def _():
        logits = acc_ref[...] + b_ref[...]          # (TM, Cp) + (1, Cp) broadcast
        # Numerically stable log-softmax along the lane-dense class axis (f32).
        m = jnp.max(logits, axis=-1, keepdims=True)
        shifted = logits - m
        lse = jnp.log(jnp.sum(jnp.exp(shifted), axis=-1, keepdims=True))
        o_ref[...] = (shifted - lse).astype(o_ref.dtype)


def prepare_dot_classifier_params(weight, bias, *, param_dtype=None):
    """One-time (cacheable) param prep: W^T padded to a lane-dense class axis.

    weight: (C, E) nn.Linear weight; bias: (C,).
    Returns (w_t (E, Cp), b2d (1, Cp) f32, C).  Padded bias columns carry a
    large negative value so padded logits contribute exp(.) == 0 to the softmax
    normalizer (no in-kernel masking needed).  Hoisting this out of the forward
    path removes a per-call HBM transpose/pad pass over E*Cp.
    """
    C, E = weight.shape
    Cp = max(128, _round_up(C, 128))
    dt = jnp.dtype(param_dtype) if param_dtype is not None else weight.dtype
    w_t = jnp.zeros((E, Cp), dt).at[:, :C].set(weight.T.astype(dt))
    b2d = jnp.full((1, Cp), _NEG_INF, jnp.float32).at[0, :C].set(
        bias.astype(jnp.float32))
    return w_t, b2d, C


def _choose_tk(E, Cp, w_item):
    """Embed-axis tile: keep W^T fully resident when it fits, else tile K."""
    if E * Cp * w_item <= _VMEM_SIZING_BUDGET // 2 or E <= 256:
        return E
    for cand in (2048, 1024, 512, 256, 128):
        if E % cand == 0:
            return cand
    # TODO(synk): non-power-of-two E at sizes where W^T cannot stay resident
    # needs padded-K masking (or class-axis tiling with an online log-softmax
    # for vocab-scale C); fall back to resident W^T here.
    return E


def dot_classifier_apply(token_embedding, w_t, b2d, num_class, *, tm=1024):
    """log_softmax(token_embedding @ W.T + b, dim=-1) with prepared params.

    token_embedding: (..., E), any float dtype (bf16 streamed as-is; W is used
    in its prepared dtype, the MXU accumulates in f32).
    """
    *lead, E = token_embedding.shape
    Cp = w_t.shape[1]
    in_dtype = token_embedding.dtype
    x_item = jnp.dtype(in_dtype).itemsize
    w_item = jnp.dtype(w_t.dtype).itemsize

    x2d = token_embedding.reshape(-1, E)
    M = x2d.shape[0]

    # --- embed (K) tiling -----------------------------------------------------
    tk = _choose_tk(E, Cp, w_item)
    grid_k = pl.cdiv(E, tk)
    w_bufs = 1 if grid_k == 1 else 2

    # --- token (M) tiling: sized from the VMEM budget ---------------------------
    # Rows per packed vreg tile for the I/O dtype: f32 -> 8, bf16 -> 16, int8 -> 32.
    pack = 8 * (4 // max(1, x_item))
    # Per-row VMEM: double-buffered x tile + double-buffered out tile + f32 acc.
    per_row = 2 * tk * x_item + 2 * Cp * x_item + 4 * Cp
    w_bytes = w_bufs * tk * Cp * w_item + Cp * 4
    tm_budget = max(pack, (_VMEM_SIZING_BUDGET - w_bytes) // per_row)

    tm = max(pack, min(tm, tm_budget, _round_up(M, pack)))
    # Megacore (v7x): keep >= 2 M-tiles when there is enough work so the
    # "parallel" axis actually splits across both TensorCores.
    if M >= 1024:
        tm = min(tm, _round_up(pl.cdiv(M, 2), pack))
    tm = max(pack, (tm // pack) * pack)
    # Ragged last M block: no host-side pad of x; Pallas masks the partial
    # block's input reads / output writes (per-row reduction => safe).
    grid_m = pl.cdiv(M, tm)

    cost = pl.CostEstimate(
        flops=2 * M * E * Cp,
        transcendentals=M * Cp,                       # one exp per logit
        bytes_accessed=(M * E * x_item                # x stream
                        + (1 if grid_k == 1 else grid_m) * E * Cp * w_item
                        + Cp * 4                      # bias
                        + M * Cp * x_item),           # output stream
    )

    if grid_k == 1:
        # Grid-invariant block index -> resident; single-buffer to halve VMEM.
        w_spec = _single_buffered_spec((tk, Cp), lambda i, k: (k, 0))
    else:
        # Block changes with k -> keep default double-buffering for overlap.
        w_spec = pl.BlockSpec((tk, Cp), lambda i, k: (k, 0))

    out = pl.pallas_call(
        _dot_classifier_kernel,
        out_shape=jax.ShapeDtypeStruct((M, Cp), in_dtype),
        grid_spec=pltpu.PrefetchScalarGridSpec(
            num_scalar_prefetch=0,
            grid=(grid_m, grid_k),
            in_specs=[
                pl.BlockSpec((tm, tk), lambda i, k: (i, k)),          # x stream
                w_spec,                                               # W^T
                _single_buffered_spec((1, Cp), lambda i, k: (0, 0)),  # bias
            ],
            out_specs=pl.BlockSpec((tm, Cp), lambda i, k: (i, 0)),
            scratch_shapes=[pltpu.VMEM((tm, Cp), jnp.float32)],
        ),
        compiler_params=pltpu.CompilerParams(
            dimension_semantics=("parallel", "arbitrary"),
            vmem_limit_bytes=_VMEM_LIMIT_BYTES,
        ),
        cost_estimate=cost,
    )(x2d, w_t, b2d)

    # The [:, :num_class] slice typically fuses with the consumer (e.g. an NLL
    # gather); consumers that accept the Cp-padded layout can skip it entirely.
    return out[:, :num_class].reshape(*lead, num_class)


def dot_classifier(token_embedding, weight, bias, *, tm=1024, param_dtype=None):
    """Convenience wrapper; for production, call prepare_... once and cache."""
    w_t, b2d, num_class = prepare_dot_classifier_params(
        weight, bias, param_dtype=param_dtype)
    return dot_classifier_apply(token_embedding, w_t, b2d, num_class, tm=tm)


if __name__ == "__main__":
    # Shapes consistent with DotClassifier.forward:
    #   token_embedding (batch=2, seq=8, embed_dim=32) -> (2, 8, num_class=10)
    batch, seq, embed_dim, num_class = 2, 8, 32, 10

    key = jax.random.PRNGKey(0)
    k_x, k_w, k_b = jax.random.split(key, 3)

    token_embedding = jax.random.normal(k_x, (batch, seq, embed_dim), jnp.float32)
    bound = 1.0 / (embed_dim ** 0.5)  # nn.Linear default init range
    weight = jax.random.uniform(k_w, (num_class, embed_dim), jnp.float32,
                                minval=-bound, maxval=bound)
    bias = jax.random.uniform(k_b, (num_class,), jnp.float32,
                              minval=-bound, maxval=bound)

    # One-time param prep (hoisted out of the forward path) + jitted apply so
    # the trailing class-slice fuses with any downstream op.
    w_t, b2d, _ = prepare_dot_classifier_params(weight, bias)
    fwd = jax.jit(lambda x: dot_classifier_apply(x, w_t, b2d, num_class))

    out = jax.block_until_ready(fwd(token_embedding))

    # Sanity check vs. pure-JAX reference (f32 path -> tight tolerance).
    ref = jax.nn.log_softmax(token_embedding @ weight.T + bias, axis=-1)
    assert out.shape == (batch, seq, num_class)
    assert jnp.allclose(out, ref, atol=1e-5, rtol=1e-5)

    print("KERNEL_OK")
</pallas_src>

<mosaic_0001>
module attributes {stable_mosaic.version = 11 : i64} {
  func.func @_dot_classifier_kernel(%arg0: i32, %arg1: i32, %arg2: memref<16x32xf32, #tpu.memory_space<vmem>>, %arg3: memref<32x128xf32, #tpu.memory_space<vmem>>, %arg4: memref<1x128xf32, #tpu.memory_space<vmem>>, %arg5: memref<16x128xf32, #tpu.memory_space<vmem>>, %arg6: memref<16x128xf32, #tpu.memory_space<vmem>>) attributes {dimension_semantics = [#tpu.dimension_semantics<parallel>, #tpu.dimension_semantics<arbitrary>], iteration_bounds = array<i64: 1, 1>, scalar_prefetch = 0 : i64, scratch_operands = 1 : i64, tpu.core_type = #tpu.core_type<tc>, window_params = [{transform_indices = @transform_0, window_bounds = array<i64: 16, 32>}, {pipeline_mode = #tpu.pipeline_mode<synchronous>, transform_indices = @transform_1, window_bounds = array<i64: 32, 128>}, {pipeline_mode = #tpu.pipeline_mode<synchronous>, transform_indices = @transform_2, window_bounds = array<i64: 1, 128>}, {transform_indices = @transform_3, window_bounds = array<i64: 16, 128>}]} {
    %c0_i32 = arith.constant 0 : i32
    %0 = arith.cmpi eq, %arg1, %c0_i32 : i32
    %1 = arith.extui %0 : i1 to i32
    %c0_i32_0 = arith.constant 0 : i32
    %2 = arith.cmpi ne, %1, %c0_i32_0 : i32
    scf.if %2 {
      %cst_10 = arith.constant 0.000000e+00 : f32
      %12 = vector.broadcast %cst_10 : f32 to vector<16x128xf32>
      %c0_11 = arith.constant 0 : index
      %c0_12 = arith.constant 0 : index
      %13 = vector.load %arg6[%c0_11, %c0_12] : memref<16x128xf32, #tpu.memory_space<vmem>>, vector<16x128xf32>
      tpu.vector_store %arg6[%c0_11, %c0_12], %12 {strides = array<i32>} : memref<16x128xf32, #tpu.memory_space<vmem>>, vector<16x128xf32>,
    } else {
    }
    %c0 = arith.constant 0 : index
    %c0_1 = arith.constant 0 : index
    %3 = vector.load %arg6[%c0, %c0_1] : memref<16x128xf32, #tpu.memory_space<vmem>>, vector<16x128xf32>
    %c0_2 = arith.constant 0 : index
    %c0_3 = arith.constant 0 : index
    %4 = vector.load %arg2[%c0_2, %c0_3] : memref<16x32xf32, #tpu.memory_space<vmem>>, vector<16x32xf32>
    %c0_4 = arith.constant 0 : index
    %c0_5 = arith.constant 0 : index
    %5 = vector.load %arg3[%c0_4, %c0_5] : memref<32x128xf32, #tpu.memory_space<vmem>>, vector<32x128xf32>
    %cst = arith.constant dense<0.000000e+00> : vector<16x128xf32>
    %6 = tpu.matmul %4, %5, %cst {dimension_numbers = #tpu.dot_dimension_numbers<[1], [0], [0], [1], [0, 0, 1, 1], [], []>} : vector<16x32xf32>, vector<32x128xf32>, vector<16x128xf32> -> vector<16x128xf32>
    %7 = arith.addf %3, %6 : vector<16x128xf32>
    %c0_6 = arith.constant 0 : index
    %c0_7 = arith.constant 0 : index
    %8 = vector.load %arg6[%c0_6, %c0_7] : memref<16x128xf32, #tpu.memory_space<vmem>>, vector<16x128xf32>
    tpu.vector_store %arg6[%c0_6, %c0_7], %7 {strides = array<i32>} : memref<16x128xf32, #tpu.memory_space<vmem>>, vector<16x128xf32>,
    %c0_i32_8 = arith.constant 0 : i32
    %9 = arith.cmpi eq, %arg1, %c0_i32_8 : i32
    %10 = arith.extui %9 : i1 to i32
    %c0_i32_9 = arith.constant 0 : i32
    %11 = arith.cmpi ne, %10, %c0_i32_9 : i32
    scf.if %11 {
      %c0_10 = arith.constant 0 : index
      %c0_11 = arith.constant 0 : index
      %12 = vector.load %arg6[%c0_10, %c0_11] : memref<16x128xf32, #tpu.memory_space<vmem>>, vector<16x128xf32>
      %c0_12 = arith.constant 0 : index
      %c0_13 = arith.constant 0 : index
      %13 = vector.load %arg4[%c0_12, %c0_13] : memref<1x128xf32, #tpu.memory_space<vmem>>, vector<1x128xf32>
      %14 = vector.broadcast %13 : vector<1x128xf32> to vector<16x128xf32>
      %15 = arith.addf %12, %14 : vector<16x128xf32>
      %cst_14 = arith.constant dense<0xFF800000> : vector<16xf32>
      %16 = vector.multi_reduction <maximumf>, %15, %cst_14 [1] : vector<16x128xf32> to vector<16xf32>
      %17 = vector.shape_cast %16 : vector<16xf32> to vector<16x1xf32>
      %18 = vector.broadcast %17 : vector<16x1xf32> to vector<16x128xf32>
      %19 = arith.subf %15, %18 : vector<16x128xf32>
      %20 = math.exp %19 : vector<16x128xf32>
      %cst_15 = arith.constant dense<0.000000e+00> : vector<16xf32>
      %21 = vector.multi_reduction <add>, %20, %cst_15 [1] : vector<16x128xf32> to vector<16xf32>
      %22 = vector.shape_cast %21 : vector<16xf32> to vector<16x1xf32>
      %23 = math.log %22 : vector<16x1xf32>
      %24 = vector.broadcast %23 : vector<16x1xf32> to vector<16x128xf32>
      %25 = arith.subf %19, %24 : vector<16x128xf32>
      %c0_16 = arith.constant 0 : index
      %c0_17 = arith.constant 0 : index
      %26 = vector.load %arg5[%c0_16, %c0_17] : memref<16x128xf32, #tpu.memory_space<vmem>>, vector<16x128xf32>
      tpu.vector_store %arg5[%c0_16, %c0_17], %25 {strides = array<i32>} : memref<16x128xf32, #tpu.memory_space<vmem>>, vector<16x128xf32>,
    } else {
    }
    return
  }
  func.func @transform_0(%arg0: i32, %arg1: i32) -> (i32, i32) {
    %c0_i32 = arith.constant 0 : i32
    return %arg0, %arg1 : i32, i32
  }
  func.func @transform_1(%arg0: i32, %arg1: i32) -> (i32, i32) {
    %c0_i32 = arith.constant 0 : i32
    %c0_i32_0 = arith.constant 0 : i32
    return %arg1, %c0_i32 : i32, i32
  }
  func.func @transform_2(%arg0: i32, %arg1: i32) -> (i32, i32) {
    %c0_i32 = arith.constant 0 : i32
    %c0_i32_0 = arith.constant 0 : i32
    %c0_i32_1 = arith.constant 0 : i32
    return %c0_i32, %c0_i32_0 : i32, i32
  }
  func.func @transform_3(%arg0: i32, %arg1: i32) -> (i32, i32) {
    %c0_i32 = arith.constant 0 : i32
    %c0_i32_0 = arith.constant 0 : i32
    return %arg0, %c0_i32 : i32, i32
  }
}

</mosaic_0001>

<llo_original>
// kernel: _lambda_.1
$region0: #{_lambda_.1}
  #allocation0 [shape = 'u32[]', space=smem, size = 0x4, offset = 0x4, fixed_abs, tag = 'smem constant byte address 0x4 - core index']
  #allocation1 [shape = 'u32[144,128]{1,0:T(1,128)}', space=vmem, size = 0x12000, scoped, tag = 'internal scratch']
  #allocation2 [shape = 'f32[16,128]{1,0:T(8,128)}', space=vmem, size = 0x2000, scoped, tag = 'scratch operand']
  %s0 = inlined_call_operand.hbm [shape: f32[16,32], index: 0, kind: input, shape index: {}]
  %s1 = inlined_call_operand.hbm [shape: f32[32,128], index: 1, kind: input, shape index: {}]
  %s2 = inlined_call_operand.vmem [shape: f32[1,128], index: 2, kind: input, shape index: {}]
  %s3 = inlined_call_operand.vmem [shape: f32[16,128], index: 3, kind: output, shape index: {}]
  %s4 = sld [smem:[#allocation0]]
  $region38: #{_lambda_.1} parent=0
    _
  %s6 = ssub.s32 1, %s4
  %s7 = scalar_select 0, %s6, %s4
  $region1: #{_lambda_.1} parent=0
    #allocation3 [shape = 'u8[8192]{0}', space=vmem, size = 0x2000, scoped, tag = 'input window, operand 0, single buffered']
    #allocation4 [shape = 's32[1]{0}', space=sflag, size = 0x4, scoped, tag = 'scoped memory for _lambda_.1']
    #allocation5 [shape = 'u8[16384]{0}', space=vmem, size = 0x4000, scoped, tag = 'input window, operand 1, single buffered']
    #allocation6 [shape = 's32[1]{0}', space=sflag, size = 0x4, scoped, tag = 'scoped memory for _lambda_.1']
    %8 = vsyncpa [#allocation4], 0
    %9 = vsyncpa [#allocation6], 0
    // Predicated region
    $region2: #{_lambda_.1} parent=1 // pred_check
      _
    $region3: #{_lambda_.1} parent=1 // pred_check_branch
      %11 = sbr.rel (0) target = $region5
    $region4: #{_lambda_.1} parent=1 // pred_region
      %s13 = ssub.s32 256, 256
      %14 = vsyncadd [#allocation4], %s13
      %s15 = sshll.u32 [#allocation3], 4
      %s16 = int_to_ptr.vmem [resolvable:$true] %s15
      %21 = dma.hbm_to_vmem [thread:$0]  %s0, 256, %s16, [#allocation4], 128, 128, 8
    $region5: #{_lambda_.1} parent=1 // pred_fallthru
      _
    // Predicated region
    $region6: #{_lambda_.1} parent=1 // pred_check
      _
    $region7: #{_lambda_.1} parent=1 // pred_check_branch
      %23 = sbr.rel (0) target = $region9
    $region8: #{_lambda_.1} parent=1 // pred_region
      %s25 = ssub.s32 512, 512
      %26 = vsyncadd [#allocation6], %s25
      %s27 = sshll.u32 [#allocation5], 4
      %s28 = int_to_ptr.vmem [resolvable:$true] %s27
      %33 = dma.hbm_to_vmem [thread:$0]  %s1, 512, %s28, [#allocation6], 128, 128, 8
    $region9: #{_lambda_.1} parent=1 // pred_fallthru
      _
    // Predicated region
    $region10: #{_lambda_.1} parent=1 // pred_check
      _
    $region11: #{_lambda_.1} parent=1 // pred_check_branch
      %35 = sbr.rel (0) target = $region13
    $region12: #{_lambda_.1} parent=1 // pred_region
      _
    $region13: #{_lambda_.1} parent=1 // pred_fallthru
      _
    // Predicated region
    $region14: #{_lambda_.1} parent=1 // pred_check
      _
    $region15: #{_lambda_.1} parent=1 // pred_check_branch
      %37 = sbr.rel (0) target = $region17
    $region16: #{_lambda_.1} parent=1 // pred_region
      %38 = dma.done [#allocation4], 256
    $region17: #{_lambda_.1} parent=1 // pred_fallthru
      _
    // Predicated region
    $region18: #{_lambda_.1} parent=1 // pred_check
      _
    $region19: #{_lambda_.1} parent=1 // pred_check_branch
      %40 = sbr.rel (0) target = $region21
    $region20: #{_lambda_.1} parent=1 // pred_region
      %41 = dma.done [#allocation6], 512
    $region21: #{_lambda_.1} parent=1 // pred_fallthru
      _
    %p42 = scmp.eq.s32.totalorder 0, 0
    // Predicated region
    $region22: #{_lambda_.1} parent=1 // pred_check
      %p43 = pneg %p42
    $region23: #{_lambda_.1} parent=1 // pred_check_branch
      %45 = sbr.rel (%p43) target = $region25
    $region24: #{_lambda_.1} parent=1 // pred_region
      %46 = vst [vmem:[#allocation2] sm:$0xff] 0.0
      %47 = vst [vmem:[#allocation2 + $0x8] sm:$0xff] 0.0
    $region25: #{_lambda_.1} parent=1 // pred_fallthru
      _
    %v48 = vld [vmem:[#allocation2] sm:$0xff]
    %v49 = vld [vmem:[#allocation2 + $0x8] sm:$0xff]
    %v50 = vld [vmem:[#allocation3] sm:$0xff]
    %v51 = vld [vmem:[#allocation3 + $0x8] sm:$0xff]
    %v52 = vld [vmem:[#allocation5] sm:$0xff]
    %v53 = vld [vmem:[#allocation5 + $0x8] sm:$0xff]
    %v54 = vld [vmem:[#allocation5 + $0x10] sm:$0xff]
    %v55 = vld [vmem:[#allocation5 + $0x18] sm:$0xff]
    %vm56 = vcmask 261120
    %v58 = vsel %vm56, %v50, 0
    %v61 = vsel %vm56, %v51, 0
    %63 = vmatprep.subr.mxu0 0.0
    %64 = vmatpush1.msra.mxu0 %v52
    %65 = vmatprep.subr.mxu0 0.0
    %66 = vmatpush1.msra.mxu0 %v53
    %67 = vmatprep.subr.mxu0 0.0
    %68 = vmatpush1.msra.mxu0 %v54
    %69 = vmatprep.subr.mxu0 0.0
    %70 = vmatpush1.msra.mxu0 %v55
    %71 = vmatprep.subr.mxu0 0.0
    %72 = vmatpush1.msra.mxu0 0.0
    %73 = vmatprep.subr.mxu0 0.0
    %74 = vmatpush1.msra.mxu0 0.0
    %75 = vmatprep.subr.mxu0 0.0
    %76 = vmatpush1.msra.mxu0 0.0
    %77 = vmatprep.subr.mxu0 0.0
    %78 = vmatpush1.msra.mxu0 0.0
    %79 = vmatprep.subr.mxu0 0.0
    %80 = vmatpush1.msra.mxu0 0.0
    %81 = vmatprep.subr.mxu0 0.0
    %82 = vmatpush1.msra.mxu0 0.0
    %83 = vmatprep.subr.mxu0 0.0
    %84 = vmatpush1.msra.mxu0 0.0
    %85 = vmatprep.subr.mxu0 0.0
    %86 = vmatpush1.msra.mxu0 0.0
    %87 = vmatprep.subr.mxu0 0.0
    %88 = vmatpush1.msra.mxu0 0.0
    %89 = vmatprep.subr.mxu0 0.0
    %90 = vmatpush1.msra.mxu0 0.0
    %91 = vmatprep.subr.mxu0 0.0
    %92 = vmatpush1.msra.mxu0 0.0
    %93 = vmatprep.subr.mxu0 0.0
    %94 = vmatpush1.msra.mxu0 0.0
    %95 = vmatprep.subr.mxu0 0.0
    %96 = vmatpush1.msra.mxu0 0.0
    %97 = vmatprep.subr.mxu0 0.0
    %98 = vmatpush1.msra.mxu0 0.0
    %99 = vmatprep.subr.mxu0 0.0
    %100 = vmatpush1.msra.mxu0 0.0
    %101 = vmatprep.subr.mxu0 0.0
    %102 = vmatpush1.msra.mxu0 0.0
    %103 = vmatprep.subr.mxu0 0.0
    %104 = vmatpush1.msra.mxu0 0.0
    %105 = vmatprep.subr.mxu0 0.0
    %106 = vmatpush1.msra.mxu0 0.0
    %107 = vmatprep.subr.mxu0 0.0
    %108 = vmatpush1.msra.mxu0 0.0
    %109 = vmatprep.subr.mxu0 0.0
    %110 = vmatpush1.msra.mxu0 0.0
    %111 = vmatprep.subr.mxu0 0.0
    %112 = vmatpush1.msra.mxu0 0.0
    %113 = vmatprep.subr.mxu0 0.0
    %114 = vmatpush1.msra.mxu0 0.0
    %115 = vmatprep.subr.mxu0 0.0
    %116 = vmatpush1.msra.mxu0 0.0
    %117 = vmatprep.subr.mxu0 0.0
    %118 = vmatpush1.msra.mxu0 0.0
    %119 = vmatprep.subr.mxu0 0.0
    %120 = vmatpush1.msra.mxu0 0.0
    %121 = vmatprep.subr.mxu0 0.0
    %122 = vmatpush1.msra.mxu0 0.0
    %123 = vmatprep.subr.mxu0 0.0
    %124 = vmatpush1.msra.mxu0 0.0
    %125 = vmatprep.subr.mxu0 0.0
    %126 = vmatpush1.msra.mxu0 0.0
    %127 = vmatprep.mubr.f32.mxu0 0.0
    %128 = vmatmul.mubr.f32.gmra.mrb[0].mxu0 %v58
    %v129 = vpop.f32.mrb[0].mxu0
    %v130 = vadd.f32 0.0, %v129
    %v131 = vpop.f32.mrb[0].mxu0
    %132 = vmatprep.mubr.f32.mxu0 0.0
    %133 = vmatmul.mubr.f32.gmra.mrb[0].mxu0 %v61
    %v134 = vpop.f32.mrb[0].mxu0
    %v135 = vadd.f32 0.0, %v134
    %v136 = vpop.f32.mrb[0].mxu0
    %137 = vdwg.mxu0
    %v138 = vadd.f32 %v48, %v130
    %v139 = vadd.f32 %v49, %v135
    %140 = vst [vmem:[#allocation2] sm:$0xff] %v138
    %141 = vst [vmem:[#allocation2 + $0x8] sm:$0xff] %v139
    // Predicated region
    $region26: #{_lambda_.1} parent=1 // pred_check
      %p142 = pneg %p42
    $region27: #{_lambda_.1} parent=1 // pred_check_branch
      %144 = sbr.rel (%p142) target = $region29
    $region28: #{_lambda_.1} parent=1 // pred_region
      %v145 = vld [vmem:[#allocation2] sm:$0xff]
      %v146 = vld [vmem:[#allocation2 + $0x8] sm:$0xff]
      %v147 = vld [vmem:[%s2] sm:$0x1]
      %v149 = vlaneseq
      %v150 = vshrl.u32 %v149, 7
      %v151 = vsub.s32 0, %v150
      %v152 = vrot.slane %v147, %v151
      %v154 = vadd.f32 %v145, %v152
      %v155 = vadd.f32 %v146, %v152
      %156 = vmax.xlane.f32.xlu0 %v154
      %v157 = vpop.xlane.xlu0 %156
      %158 = vmax.xlane.f32.xlu0 %v155
      %v159 = vpop.xlane.xlu0 %158
      %v160 = vsub.f32 %v154, %v157
      %v161 = vsub.f32 %v155, %v159
      %v162 = vmul.f32 %v160, 1.442695
      %v163 = vpow.pop %v162
      %v164 = vmul.f32 %v161, 1.442695
      %v165 = vpow.pop %v164
      %166 = vadd.xlane.f32.xlu0 %v163
      %v167 = vpop.xlane.xlu0 %166
      %168 = vadd.xlane.f32.xlu0 %v165
      %v169 = vpop.xlane.xlu0 %168
      %v170 = vlog2.pop %v167
      %v171 = vmul.f32 %v170, 0.6931472
      %v172 = vlog2.pop %v169
      %v173 = vmul.f32 %v172, 0.6931472
      %v174 = vsub.f32 %v160, %v171
      %v175 = vsub.f32 %v161, %v173
      %176 = vst [vmem:[%s3] sm:$0xff] %v174
      %177 = vst [vmem:[%s3 + $0x8] sm:$0xff] %v175
    $region29: #{_lambda_.1} parent=1 // pred_fallthru
      _
    // Predicated region
    $region30: #{_lambda_.1} parent=1 // pred_check
      _
    $region31: #{_lambda_.1} parent=1 // pred_check_branch
      %179 = sbr.rel (0) target = $region33
    $region32: #{_lambda_.1} parent=1 // pred_region
      _
    $region33: #{_lambda_.1} parent=1 // pred_fallthru
      _
    // Predicated region
    $region34: #{_lambda_.1} parent=1 // pred_check
      _
    $region35: #{_lambda_.1} parent=1 // pred_check_branch
      %181 = sbr.rel (0) target = $region37
    $region36: #{_lambda_.1} parent=1 // pred_region
      _
    $region37: #{_lambda_.1} parent=1 // pred_fallthru
      _
    %182 = vsyncpa [#allocation4], 1
    %183 = vsyncpa [#allocation6], 1

</llo_original>
